<compile_context>
chip_gen: v5e
topology: v5e:2x2
jax: 0.10.0
libtpu: 0.0.40
codegen_flags: <defaults>
</compile_context>

<pallas_src>
import jax
import jax.numpy as jnp
import numpy as np
from jax import lax
from jax.experimental import pallas as pl
from jax.experimental.pallas import tpu as pltpu

EPS = 1e-5


# ------------------------------------------------------------------------ kernels
def _rows_kernel(x_ref, w_ref, o_ref):
    """Whole-D path. x_ref: (tm, D), w_ref: (D, D) [gamma folded], o_ref: (tm, D)."""
    xf = x_ref[...].astype(jnp.float32)
    # RMSNorm (f32 reduction + elementwise).
    rms_mean = jnp.mean(xf * xf, axis=-1, keepdims=True)
    x_norm = (xf * lax.rsqrt(rms_mean + EPS)).astype(w_ref.dtype)
    # Sublayer: dense projection on the MXU, f32 accumulation.
    y = jnp.dot(x_norm, w_ref[...], preferred_element_type=jnp.float32)
    # Residual in f32, single final cast.
    o_ref[...] = (xf + y).astype(o_ref.dtype)


def _cols_kernel(x_ref, w_ref, o_ref, inv_ref):
    """Column-tiled path for large D.
    x_ref: (tm, D) [revalidated across j], w_ref: (D, tn), o_ref: (tm, tn),
    inv_ref: (tm, 1) f32 scratch caching rsqrt(mean(x^2)+eps) across column tiles."""
    j = pl.program_id(1)
    tn = o_ref.shape[-1]
    xf = x_ref[...].astype(jnp.float32)

    @pl.when(j == 0)
    def _():
        rms_mean = jnp.mean(xf * xf, axis=-1, keepdims=True)
        inv_ref[...] = lax.rsqrt(rms_mean + EPS)

    x_norm = (xf * inv_ref[...]).astype(w_ref.dtype)
    y = jnp.dot(x_norm, w_ref[...], preferred_element_type=jnp.float32)
    col0 = pl.multiple_of(j * tn, 128)
    x_res = x_ref[:, pl.ds(col0, tn)].astype(jnp.float32)
    o_ref[...] = (x_res + y).astype(o_ref.dtype)


# -------------------------------------------------------------- hardware-aware sizing
def _tpu_info():
    try:
        return pltpu.get_tpu_info()
    except Exception:
        return None


def _vmem_budget_bytes():
    info = _tpu_info()
    phys = getattr(info, "vmem_capacity_bytes", None) if info is not None else None
    if not phys or phys <= 0:
        phys = 64 << 20  # conservative default (v7x-sized per-TC VMEM)
    phys = int(phys)
    # Leave headroom for the compiler's own temporaries / internal scratch:
    # ~51 MiB usable on a 64 MiB part, ~102 MiB on a 128 MiB part.
    return max(32 << 20, phys - max(12 << 20, phys // 5))


def _num_tensorcores():
    info = _tpu_info()
    if info is not None:
        for name in ("num_cores", "core_count", "num_tensorcores", "tensorcores_per_chip"):
            n = getattr(info, name, None)
            if isinstance(n, int) and n > 0:
                return n
    return 1  # v5e/v6e default; only used to gate the grid>=2 clamp


def _pick_tm(M, pack, cap_rows, num_tc, total_bytes):
    """Largest row tile that divides M, is a multiple of `pack`, and is <= cap_rows.
    On multi-TC chips keep the grid >= 2 steps (megacore sharding), except for the
    tiny-problem fast path where a single full-extent block wins."""
    cap = max(pack, min(cap_rows, M))
    if M <= cap and (num_tc < 2 or total_bytes <= (2 << 20)):
        return M  # small-M fast path: one block, no extra pipeline prologue/epilogue
    if num_tc >= 2 and M >= 2 * pack:
        cap = min(cap, max(pack, M // 2))
    c = (cap // pack) * pack
    while c >= pack:
        if M % c == 0:
            return c
        c -= pack
    return pack  # unreachable: M is padded to a multiple of pack


# --------------------------------------------------------------------- pallas callers
def _call_rows(x2, w_folded, M_pad, D, tm, vmem_limit):
    def build(single_buffer_w):
        if single_buffer_w:
            # Constant index_map -> W is DMA'd once; a single buffer saves D*D*itemsize VMEM.
            w_spec = pl.BlockSpec((D, D), lambda i: (0, 0), pipeline_mode=pl.Buffered(1))
        else:
            w_spec = pl.BlockSpec((D, D), lambda i: (0, 0))
        return pl.pallas_call(
            _rows_kernel,
            out_shape=jax.ShapeDtypeStruct((M_pad, D), x2.dtype),
            grid_spec=pltpu.PrefetchScalarGridSpec(
                num_scalar_prefetch=0,
                grid=(M_pad // tm,),
                in_specs=[
                    pl.BlockSpec((tm, D), lambda i: (i, 0)),  # activation rows
                    w_spec,                                   # folded weight (resident)
                ],
                out_specs=pl.BlockSpec((tm, D), lambda i: (i, 0)),
            ),
            compiler_params=pltpu.CompilerParams(
                dimension_semantics=("parallel",),
                vmem_limit_bytes=int(vmem_limit),
            ),
        )

    try:
        return build(True)(x2, w_folded)
    except Exception:
        # TODO(synk): some jax builds reject pl.Buffered(1); fall back to the default
        # double-buffered weight (costs one extra DxD VMEM copy, still correct).
        return build(False)(x2, w_folded)


def _call_cols(x2, w_folded, M_pad, D, pack, bs, wbs, budget, num_tc, tm_max,
               total_bytes, column_tn):
    # Pick a lane-dense column tile tn (multiple of 128 dividing D) and a row tile tm so
    # that x 2-buf (tm,D) + out 2-buf (tm,tn) + W 2-buf (D,tn) + f32 temporaries fit.
    if column_tn is not None and D % int(column_tn) == 0 and int(column_tn) % 128 == 0:
        tn_candidates = [int(column_tn)]
    else:
        tn_candidates = [c for c in (512, 256, 128) if D % c == 0]
    tn, tm = 128, pack
    for cand in tn_candidates:
        w_bytes = 2 * D * cand * wbs
        per_row = 2 * D * bs + 2 * cand * bs + D * (4 + wbs) + cand * 4 + 4
        fit = (budget - w_bytes) // per_row if budget > w_bytes else 0
        if fit >= pack:
            tn = cand
            tm = _pick_tm(M_pad, pack, min(tm_max, int(fit)), num_tc, total_bytes)
            break

    return pl.pallas_call(
        _cols_kernel,
        out_shape=jax.ShapeDtypeStruct((M_pad, D), x2.dtype),
        grid_spec=pltpu.PrefetchScalarGridSpec(
            num_scalar_prefetch=0,
            grid=(M_pad // tm, D // tn),
            in_specs=[
                pl.BlockSpec((tm, D), lambda i, j: (i, 0)),   # x rows: revalidated across j
                pl.BlockSpec((D, tn), lambda i, j: (0, j)),   # weight column tile
            ],
            out_specs=pl.BlockSpec((tm, tn), lambda i, j: (i, j)),
            scratch_shapes=[pltpu.VMEM((tm, 1), jnp.float32)],
        ),
        compiler_params=pltpu.CompilerParams(
            dimension_semantics=("parallel", "arbitrary"),
            vmem_limit_bytes=int(budget),
        ),
    )(x2, w_folded)


# --------------------------------------------------------------------------- wrapper
def sublayer_connection(x, gamma, w, *, tm_max=1024, use_bf16_mxu=False,
                        force_column_split=False, column_tn=None):
    """out = x + RMSNorm(x; gamma) @ w.   x: (B, T, D), gamma: (D,), w: (D, D)."""
    B, T, D = x.shape
    M = B * T
    act_dtype = x.dtype
    bs = jnp.dtype(act_dtype).itemsize

    # MXU operand dtype (opt-in bf16 path for f32 activations at large D).
    mxu_dtype = jnp.bfloat16 if (use_bf16_mxu and act_dtype == jnp.float32) else act_dtype
    wbs = jnp.dtype(mxu_dtype).itemsize

    # Fold the RMSNorm gain into the sublayer weight:
    #   (x_norm * gamma) @ W == x_norm @ (gamma[:, None] * W)
    w_folded = (gamma.astype(jnp.float32)[:, None] * w.astype(jnp.float32)).astype(mxu_dtype)

    # Pad rows to the sublane packing so every tile is fully packed (no masked stores).
    pack = 16 if bs == 2 else 8
    M_pad = ((M + pack - 1) // pack) * pack
    x2 = x.reshape(M, D)
    if M_pad != M:
        x2 = jnp.pad(x2, ((0, M_pad - M), (0, 0)))

    budget = _vmem_budget_bytes()
    num_tc = _num_tensorcores()
    total_bytes = M_pad * D * bs

    # Footprint of the whole-D path (W single-buffered, counted once).
    w_resident = D * D * wbs
    per_row = D * (4 * bs + 8 + wbs)  # x/out 2-buf + f32 temps (xf, y) + x_norm
    rows_fit = (budget - w_resident) // per_row if budget > w_resident else 0

    use_cols = force_column_split or rows_fit < pack
    can_cols = (D % 128 == 0) and D >= 256
    if use_cols and can_cols:
        out = _call_cols(x2, w_folded, M_pad, D, pack, bs, wbs, budget, num_tc,
                         tm_max, total_bytes, column_tn)
    else:
        # Note: D should be a multiple of 128 for lane-dense, unmasked stores; a
        # full-extent last dim is still correct otherwise (just slower).
        tm = _pick_tm(M_pad, pack, min(tm_max, max(int(rows_fit), pack)), num_tc,
                      total_bytes)
        out = _call_rows(x2, w_folded, M_pad, D, tm, budget)

    return out[:M].reshape(B, T, D)


# ------------------------------------------------------------------------- reference
def _reference(x, gamma, w):
    # Mirrors the PyTorch module: RMSNorm (f32 math, cast back) -> Linear -> residual.
    xf = x.astype(jnp.float32)
    rms_mean = jnp.mean(xf * xf, axis=-1, keepdims=True)
    x_norm = xf * lax.rsqrt(rms_mean + EPS)
    x_norm = (x_norm * gamma.astype(jnp.float32)).astype(x.dtype)
    y = jnp.dot(x_norm, w.astype(x.dtype), preferred_element_type=jnp.float32)
    return x + y.astype(x.dtype)


if __name__ == "__main__":
    key = jax.random.PRNGKey(0)
    kx, kw, kg, kx2, kx3, kw3 = jax.random.split(key, 6)

    # Case 1: small shape consistent with the module (batch=2, seq=8, emb=128).
    B, T, D = 2, 8, 128
    x = jax.random.normal(kx, (B, T, D), dtype=jnp.float32)
    gamma = 1.0 + 0.1 * jax.random.normal(kg, (D,), dtype=jnp.float32)  # module init is ones
    w = jax.random.normal(kw, (D, D), dtype=jnp.float32) * 0.02
    out = jax.block_until_ready(sublayer_connection(x, gamma, w))
    np.testing.assert_allclose(np.asarray(out), np.asarray(_reference(x, gamma, w)),
                               rtol=2e-5, atol=2e-5)

    # Case 2: more rows (exercises the larger row-tile path).
    x_big = jax.random.normal(kx2, (4, 256, D), dtype=jnp.float32)
    out_big = jax.block_until_ready(sublayer_connection(x_big, gamma, w))
    np.testing.assert_allclose(np.asarray(out_big),
                               np.asarray(_reference(x_big, gamma, w)),
                               rtol=2e-5, atol=2e-5)

    # Case 3: output-column-tiled path (forced here; used automatically for large D on v7x).
    D3 = 256
    x3 = jax.random.normal(kx3, (2, 64, D3), dtype=jnp.float32)
    gamma3 = 1.0 + 0.1 * jax.random.normal(kg, (D3,), dtype=jnp.float32)
    w3 = jax.random.normal(kw3, (D3, D3), dtype=jnp.float32) * 0.02
    out3 = jax.block_until_ready(
        sublayer_connection(x3, gamma3, w3, force_column_split=True, column_tn=128))
    np.testing.assert_allclose(np.asarray(out3),
                               np.asarray(_reference(x3, gamma3, w3)),
                               rtol=2e-5, atol=2e-5)

    # Case 4: bf16 activations (packed sublanes, bf16 MXU path, f32 residual accumulate).
    x4 = x.astype(jnp.bfloat16)
    out4 = jax.block_until_ready(sublayer_connection(x4, gamma, w))
    np.testing.assert_allclose(np.asarray(out4, dtype=np.float32),
                               np.asarray(_reference(x4, gamma, w), dtype=np.float32),
                               rtol=5e-2, atol=5e-2)

    print("KERNEL_OK")
</pallas_src>

<mosaic_0001>
module attributes {stable_mosaic.version = 11 : i64} {
  func.func @_rows_kernel(%arg0: i32, %arg1: memref<16x128xf32, #tpu.memory_space<vmem>>, %arg2: memref<128x128xf32, #tpu.memory_space<vmem>>, %arg3: memref<16x128xf32, #tpu.memory_space<vmem>>) attributes {dimension_semantics = [#tpu.dimension_semantics<parallel>], iteration_bounds = array<i64: 1>, scalar_prefetch = 0 : i64, scratch_operands = 0 : i64, tpu.core_type = #tpu.core_type<tc>, window_params = [{transform_indices = @transform_0, window_bounds = array<i64: 16, 128>}, {pipeline_mode = #tpu.pipeline_mode<synchronous>, transform_indices = @transform_1, window_bounds = array<i64: 128, 128>}, {transform_indices = @transform_2, window_bounds = array<i64: 16, 128>}]} {
    %c0 = arith.constant 0 : index
    %c0_0 = arith.constant 0 : index
    %0 = vector.load %arg1[%c0, %c0_0] : memref<16x128xf32, #tpu.memory_space<vmem>>, vector<16x128xf32>
    %1 = arith.mulf %0, %0 : vector<16x128xf32>
    %cst = arith.constant dense<0.000000e+00> : vector<16xf32>
    %2 = vector.multi_reduction <add>, %1, %cst [1] : vector<16x128xf32> to vector<16xf32>
    %3 = vector.shape_cast %2 : vector<16xf32> to vector<16x1xf32>
    %cst_1 = arith.constant 1.280000e+02 : f32
    %4 = vector.broadcast %cst_1 : f32 to vector<16x1xf32>
    %5 = arith.divf %3, %4 : vector<16x1xf32>
    %cst_2 = arith.constant 9.99999974E-6 : f32
    %6 = vector.broadcast %cst_2 : f32 to vector<16x1xf32>
    %7 = arith.addf %5, %6 : vector<16x1xf32>
    %8 = math.rsqrt %7 : vector<16x1xf32>
    %9 = vector.broadcast %8 : vector<16x1xf32> to vector<16x128xf32>
    %10 = arith.mulf %0, %9 : vector<16x128xf32>
    %c0_3 = arith.constant 0 : index
    %c0_4 = arith.constant 0 : index
    %11 = vector.load %arg2[%c0_3, %c0_4] : memref<128x128xf32, #tpu.memory_space<vmem>>, vector<128x128xf32>
    %cst_5 = arith.constant dense<0.000000e+00> : vector<16x128xf32>
    %12 = tpu.matmul %10, %11, %cst_5 {dimension_numbers = #tpu.dot_dimension_numbers<[1], [0], [0], [1], [0, 0, 1, 1], [], []>} : vector<16x128xf32>, vector<128x128xf32>, vector<16x128xf32> -> vector<16x128xf32>
    %13 = arith.addf %0, %12 : vector<16x128xf32>
    %c0_6 = arith.constant 0 : index
    %c0_7 = arith.constant 0 : index
    %14 = vector.load %arg3[%c0_6, %c0_7] : memref<16x128xf32, #tpu.memory_space<vmem>>, vector<16x128xf32>
    tpu.vector_store %arg3[%c0_6, %c0_7], %13 {strides = array<i32>} : memref<16x128xf32, #tpu.memory_space<vmem>>, vector<16x128xf32>,
    return
  }
  func.func @transform_0(%arg0: i32) -> (i32, i32) {
    %c0_i32 = arith.constant 0 : i32
    %c0_i32_0 = arith.constant 0 : i32
    return %arg0, %c0_i32 : i32, i32
  }
  func.func @transform_1(%arg0: i32) -> (i32, i32) {
    %c0_i32 = arith.constant 0 : i32
    %c0_i32_0 = arith.constant 0 : i32
    %c0_i32_1 = arith.constant 0 : i32
    return %c0_i32, %c0_i32_0 : i32, i32
  }
  func.func @transform_2(%arg0: i32) -> (i32, i32) {
    %c0_i32 = arith.constant 0 : i32
    %c0_i32_0 = arith.constant 0 : i32
    return %arg0, %c0_i32 : i32, i32
  }
}

module attributes {stable_mosaic.version = 11 : i64} {
  func.func @_rows_kernel(%arg0: i32, %arg1: memref<16x128xf32, #tpu.memory_space<vmem>>, %arg2: memref<128x128xf32, #tpu.memory_space<vmem>>, %arg3: memref<16x128xf32, #tpu.memory_space<vmem>>) attributes {dimension_semantics = [#tpu.dimension_semantics<parallel>], iteration_bounds = array<i64: 1>, scalar_prefetch = 0 : i64, scratch_operands = 0 : i64, tpu.core_type = #tpu.core_type<tc>, window_params = [{transform_indices = @transform_0, window_bounds = array<i64: 16, 128>}, {pipeline_mode = #tpu.pipeline_mode<synchronous>, transform_indices = @transform_1, window_bounds = array<i64: 128, 128>}, {transform_indices = @transform_2, window_bounds = array<i64: 16, 128>}]} {
    %c0 = arith.constant 0 : index
    %c0_0 = arith.constant 0 : index
    %0 = vector.load %arg1[%c0, %c0_0] : memref<16x128xf32, #tpu.memory_space<vmem>>, vector<16x128xf32>
    %1 = arith.mulf %0, %0 : vector<16x128xf32>
    %cst = arith.constant dense<0.000000e+00> : vector<16xf32>
    %2 = vector.multi_reduction <add>, %1, %cst [1] : vector<16x128xf32> to vector<16xf32>
    %3 = vector.shape_cast %2 : vector<16xf32> to vector<16x1xf32>
    %cst_1 = arith.constant 1.280000e+02 : f32
    %4 = vector.broadcast %cst_1 : f32 to vector<16x1xf32>
    %5 = arith.divf %3, %4 : vector<16x1xf32>
    %cst_2 = arith.constant 9.99999974E-6 : f32
    %6 = vector.broadcast %cst_2 : f32 to vector<16x1xf32>
    %7 = arith.addf %5, %6 : vector<16x1xf32>
    %8 = math.rsqrt %7 : vector<16x1xf32>
    %9 = vector.broadcast %8 : vector<16x1xf32> to vector<16x128xf32>
    %10 = arith.mulf %0, %9 : vector<16x128xf32>
    %c0_3 = arith.constant 0 : index
    %c0_4 = arith.constant 0 : index
    %11 = vector.load %arg2[%c0_3, %c0_4] : memref<128x128xf32, #tpu.memory_space<vmem>>, vector<128x128xf32>
    %cst_5 = arith.constant dense<0.000000e+00> : vector<16x128xf32>
    %12 = tpu.matmul %10, %11, %cst_5 {dimension_numbers = #tpu.dot_dimension_numbers<[1], [0], [0], [1], [0, 0, 1, 1], [], []>} : vector<16x128xf32>, vector<128x128xf32>, vector<16x128xf32> -> vector<16x128xf32>
    %13 = arith.addf %0, %12 : vector<16x128xf32>
    %c0_6 = arith.constant 0 : index
    %c0_7 = arith.constant 0 : index
    %14 = vector.load %arg3[%c0_6, %c0_7] : memref<16x128xf32, #tpu.memory_space<vmem>>, vector<16x128xf32>
    tpu.vector_store %arg3[%c0_6, %c0_7], %13 {strides = array<i32>} : memref<16x128xf32, #tpu.memory_space<vmem>>, vector<16x128xf32>,
    return
  }
  func.func @transform_0(%arg0: i32) -> (i32, i32) {
    %c0_i32 = arith.constant 0 : i32
    %c0_i32_0 = arith.constant 0 : i32
    return %arg0, %c0_i32 : i32, i32
  }
  func.func @transform_1(%arg0: i32) -> (i32, i32) {
    %c0_i32 = arith.constant 0 : i32
    %c0_i32_0 = arith.constant 0 : i32
    %c0_i32_1 = arith.constant 0 : i32
    return %c0_i32, %c0_i32_0 : i32, i32
  }
  func.func @transform_2(%arg0: i32) -> (i32, i32) {
    %c0_i32 = arith.constant 0 : i32
    %c0_i32_0 = arith.constant 0 : i32
    return %arg0, %c0_i32 : i32, i32
  }
}

</mosaic_0001>

<llo_original>
// kernel: tpu_custom_call.1
$region0: #{tpu_custom_call.1}
  #allocation0 [shape = 'u32[]', space=smem, size = 0x4, offset = 0x4, fixed_abs, tag = 'smem constant byte address 0x4 - core index']
  #allocation1 [shape = 'u32[72,128]{1,0:T(1,128)}', space=vmem, size = 0x9000, scoped, tag = 'internal scratch']
  %s0 = inlined_call_operand.hbm [shape: f32[16,128], index: 0, kind: input, shape index: {}]
  %s1 = inlined_call_operand.hbm [shape: f32[128,128], index: 1, kind: input, shape index: {}]
  %s2 = inlined_call_operand.hbm [shape: f32[16,128], index: 2, kind: output, shape index: {}]
  %s3 = sld [smem:[#allocation0]]
  $region26: #{tpu_custom_call.1} parent=0
    _
  %s5 = ssub.s32 1, %s3
  %s6 = scalar_select 0, %s5, %s3
  $region1: #{tpu_custom_call.1} parent=0
    #allocation2 [shape = 'u8[8192]{0}', space=vmem, size = 0x2000, scoped, tag = 'input window, operand 0, single buffered']
    #allocation3 [shape = 's32[1]{0}', space=sflag, size = 0x4, scoped, tag = 'scoped memory for tpu_custom_call.1']
    #allocation4 [shape = 's32[1]{0}', space=sflag, size = 0x4, scoped, tag = 'scoped memory for tpu_custom_call.1']
    #allocation5 [shape = 'u8[65536]{0}', space=vmem, size = 0x10000, scoped, tag = 'input window, operand 1, single buffered']
    #allocation6 [shape = 's32[1]{0}', space=sflag, size = 0x4, scoped, tag = 'scoped memory for tpu_custom_call.1']
    #allocation7 [shape = 'u8[8192]{0}', space=vmem, size = 0x2000, scoped, tag = 'output window, operand 0, single buffered']
    %7 = vsyncpa [#allocation3], 0
    %8 = vsyncpa [#allocation6], 0
    %9 = vsyncpa [#allocation4], 0
    // Predicated region
    $region2: #{tpu_custom_call.1} parent=1 // pred_check
      _
    $region3: #{tpu_custom_call.1} parent=1 // pred_check_branch
      %11 = sbr.rel (0) target = $region5
    $region4: #{tpu_custom_call.1} parent=1 // pred_region
      %13 = vsyncadd [#allocation3], 0
      %s14 = sshll.u32 %s0, 4
      %s15 = int_to_ptr.hbm [resolvable:$true] %s14
      %s16 = sshll.u32 [#allocation2], 4
      %s17 = int_to_ptr.vmem [resolvable:$true] %s16
      %22 = dma.hbm_to_vmem [thread:$0]  %s15, 256, %s17, [#allocation3], 128, 128, 8
    $region5: #{tpu_custom_call.1} parent=1 // pred_fallthru
      _
    // Predicated region
    $region6: #{tpu_custom_call.1} parent=1 // pred_check
      _
    $region7: #{tpu_custom_call.1} parent=1 // pred_check_branch
      %24 = sbr.rel (0) target = $region9
    $region8: #{tpu_custom_call.1} parent=1 // pred_region
      %26 = vsyncadd [#allocation6], 0
      %s27 = sshll.u32 %s1, 4
      %s28 = int_to_ptr.hbm [resolvable:$true] %s27
      %s29 = sshll.u32 [#allocation5], 4
      %s30 = int_to_ptr.vmem [resolvable:$true] %s29
      %35 = dma.hbm_to_vmem [thread:$0]  %s28, 2048, %s30, [#allocation6], 128, 128, 8
    $region9: #{tpu_custom_call.1} parent=1 // pred_fallthru
      _
    // Predicated region
    $region10: #{tpu_custom_call.1} parent=1 // pred_check
      _
    $region11: #{tpu_custom_call.1} parent=1 // pred_check_branch
      %37 = sbr.rel (0) target = $region13
    $region12: #{tpu_custom_call.1} parent=1 // pred_region
      %39 = dma.done [#allocation3], 256
    $region13: #{tpu_custom_call.1} parent=1 // pred_fallthru
      _
    // Predicated region
    $region14: #{tpu_custom_call.1} parent=1 // pred_check
      _
    $region15: #{tpu_custom_call.1} parent=1 // pred_check_branch
      %41 = sbr.rel (0) target = $region17
    $region16: #{tpu_custom_call.1} parent=1 // pred_region
      %43 = dma.done [#allocation6], 2048
    $region17: #{tpu_custom_call.1} parent=1 // pred_fallthru
      _
    %v44 = vld [vmem:[#allocation2] sm:$0xff]
    %v45 = vld [vmem:[#allocation2 + $0x8] sm:$0xff]
    %v46 = vmul.f32 %v44, %v44
    %v47 = vmul.f32 %v45, %v45
    %48 = vadd.xlane.f32.xlu0 %v46
    %v49 = vpop.xlane.xlu0 %48
    %50 = vadd.xlane.f32.xlu0 %v47
    %v51 = vpop.xlane.xlu0 %50
    %v52 = vrcp.pop 128.0
    %v53 = vmul.f32 128.0, %v52
    %v54 = vsub.f32 1.0, %v53
    %v55 = vmul.f32 %v52, %v54
    %v56 = vadd.f32 %v52, %v55
    %vm57 = vweird.f32 %v52
    %v58 = vsel %vm57, %v52, %v56
    %v59 = vmul.f32 %v49, %v58
    %v60 = vmul.f32 %v51, %v58
    %v61 = vadd.f32 %v59, 1e-05
    %v62 = vadd.f32 %v60, 1e-05
    %v63 = vrsqrt.pop %v61
    %v64 = vmul.f32 %v63, %v61
    %v65 = vmul.f32 %v64, %v63
    %v66 = vmul.f32 0.5, %v65
    %v67 = vsub.f32 1.5, %v66
    %v68 = vmul.f32 %v63, %v67
    %vm69 = vweird.f32 %v61
    %vm70 = vweird.f32 %v63
    %vm71 = vmor %vm69, %vm70
    %v72 = vsel %vm71, %v63, %v68
    %v73 = vrsqrt.pop %v62
    %v74 = vmul.f32 %v73, %v62
    %v75 = vmul.f32 %v74, %v73
    %v76 = vmul.f32 0.5, %v75
    %v77 = vsub.f32 1.5, %v76
    %v78 = vmul.f32 %v73, %v77
    %vm79 = vweird.f32 %v62
    %vm80 = vweird.f32 %v73
    %vm81 = vmor %vm79, %vm80
    %v82 = vsel %vm81, %v73, %v78
    %v83 = vmul.f32 %v44, %v72
    %v84 = vmul.f32 %v45, %v82
    %v85 = vld [vmem:[#allocation5] sm:$0xff]
    %v86 = vld [vmem:[#allocation5 + $0x8] sm:$0xff]
    %v87 = vld [vmem:[#allocation5 + $0x10] sm:$0xff]
    %v88 = vld [vmem:[#allocation5 + $0x18] sm:$0xff]
    %v89 = vld [vmem:[#allocation5 + $0x20] sm:$0xff]
    %v90 = vld [vmem:[#allocation5 + $0x28] sm:$0xff]
    %v91 = vld [vmem:[#allocation5 + $0x30] sm:$0xff]
    %v92 = vld [vmem:[#allocation5 + $0x38] sm:$0xff]
    %v93 = vld [vmem:[#allocation5 + $0x40] sm:$0xff]
    %v94 = vld [vmem:[#allocation5 + $0x48] sm:$0xff]
    %v95 = vld [vmem:[#allocation5 + $0x50] sm:$0xff]
    %v96 = vld [vmem:[#allocation5 + $0x58] sm:$0xff]
    %v97 = vld [vmem:[#allocation5 + $0x60] sm:$0xff]
    %v98 = vld [vmem:[#allocation5 + $0x68] sm:$0xff]
    %v99 = vld [vmem:[#allocation5 + $0x70] sm:$0xff]
    %v100 = vld [vmem:[#allocation5 + $0x78] sm:$0xff]
    %101 = vmatpush.msra.mxu0 %v100
    %102 = vmatpush.msra.mxu0 %v99
    %103 = vmatpush.msra.mxu0 %v98
    %104 = vmatpush.msra.mxu0 %v97
    %105 = vmatpush.msra.mxu0 %v96
    %106 = vmatpush.msra.mxu0 %v95
    %107 = vmatpush.msra.mxu0 %v94
    %108 = vmatpush.msra.mxu0 %v93
    %109 = vmatpush.msra.mxu0 %v92
    %110 = vmatpush.msra.mxu0 %v91
    %111 = vmatpush.msra.mxu0 %v90
    %112 = vmatpush.msra.mxu0 %v89
    %113 = vmatpush.msra.mxu0 %v88
    %114 = vmatpush.msra.mxu0 %v87
    %115 = vmatpush.msra.mxu0 %v86
    %116 = vmatpush.msra.mxu0 %v85
    %117 = vmatmul.f32.gmra.mxu0 %v83
    %v118 = vpop.f32.mrf.mxu0
    %v119 = vadd.f32 0.0, %v118
    %120 = vmatmul.f32.gmra.mxu0 %v84
    %v121 = vpop.f32.mrf.mxu0
    %v122 = vadd.f32 0.0, %v121
    %123 = vdwg.mxu0
    %v124 = vadd.f32 %v44, %v119
    %v125 = vadd.f32 %v45, %v122
    %126 = vst [vmem:[#allocation7] sm:$0xff] %v124
    %127 = vst [vmem:[#allocation7 + $0x8] sm:$0xff] %v125
    // Predicated region
    $region18: #{tpu_custom_call.1} parent=1 // pred_check
      _
    $region19: #{tpu_custom_call.1} parent=1 // pred_check_branch
      %129 = sbr.rel (0) target = $region21
    $region20: #{tpu_custom_call.1} parent=1 // pred_region
      %131 = vsyncadd [#allocation4], 0
      %s132 = sshll.u32 [#allocation7], 4
      %s133 = int_to_ptr.vmem [resolvable:$true] %s132
      %s134 = sshll.u32 %s2, 4
      %s135 = int_to_ptr.hbm [resolvable:$true] %s134
      %140 = dma.vmem_to_hbm [thread:$0]  %s133, 256, %s135, [#allocation4], 128, 128, 8
    $region21: #{tpu_custom_call.1} parent=1 // pred_fallthru
      _
    // Predicated region
    $region22: #{tpu_custom_call.1} parent=1 // pred_check
      _
    $region23: #{tpu_custom_call.1} parent=1 // pred_check_branch
      %142 = sbr.rel (0) target = $region25
    $region24: #{tpu_custom_call.1} parent=1 // pred_region
      %144 = dma.done [#allocation4], 256
    $region25: #{tpu_custom_call.1} parent=1 // pred_fallthru
      _
    %145 = vsyncpa [#allocation3], 1
    %146 = vsyncpa [#allocation6], 1
    %147 = vsyncpa [#allocation4], 1

// kernel: tpu_custom_call.1
$region0: #{tpu_custom_call.1}
  #allocation0 [shape = 'u32[]', space=smem, size = 0x4, offset = 0x4, fixed_abs, tag = 'smem constant byte address 0x4 - core index']
  #allocation1 [shape = 'u32[72,128]{1,0:T(1,128)}', space=vmem, size = 0x9000, scoped, tag = 'internal scratch']
  %s0 = inlined_call_operand.hbm [shape: f32[16,128], index: 0, kind: input, shape index: {}]
  %s1 = inlined_call_operand.hbm [shape: f32[128,128], index: 1, kind: input, shape index: {}]
  %s2 = inlined_call_operand.hbm [shape: f32[16,128], index: 2, kind: output, shape index: {}]
  %s3 = sld [smem:[#allocation0]]
  $region26: #{tpu_custom_call.1} parent=0
    _
  %s5 = ssub.s32 1, %s3
  %s6 = scalar_select 0, %s5, %s3
  $region1: #{tpu_custom_call.1} parent=0
    #allocation2 [shape = 'u8[8192]{0}', space=vmem, size = 0x2000, scoped, tag = 'input window, operand 0, single buffered']
    #allocation3 [shape = 's32[1]{0}', space=sflag, size = 0x4, scoped, tag = 'scoped memory for tpu_custom_call.1']
    #allocation4 [shape = 's32[1]{0}', space=sflag, size = 0x4, scoped, tag = 'scoped memory for tpu_custom_call.1']
    #allocation5 [shape = 'u8[65536]{0}', space=vmem, size = 0x10000, scoped, tag = 'input window, operand 1, single buffered']
    #allocation6 [shape = 's32[1]{0}', space=sflag, size = 0x4, scoped, tag = 'scoped memory for tpu_custom_call.1']
    #allocation7 [shape = 'u8[8192]{0}', space=vmem, size = 0x2000, scoped, tag = 'output window, operand 0, single buffered']
    %7 = vsyncpa [#allocation3], 0
    %8 = vsyncpa [#allocation6], 0
    %9 = vsyncpa [#allocation4], 0
    // Predicated region
    $region2: #{tpu_custom_call.1} parent=1 // pred_check
      _
    $region3: #{tpu_custom_call.1} parent=1 // pred_check_branch
      %11 = sbr.rel (0) target = $region5
    $region4: #{tpu_custom_call.1} parent=1 // pred_region
      %13 = vsyncadd [#allocation3], 0
      %s14 = sshll.u32 %s0, 4
      %s15 = int_to_ptr.hbm [resolvable:$true] %s14
      %s16 = sshll.u32 [#allocation2], 4
      %s17 = int_to_ptr.vmem [resolvable:$true] %s16
      %22 = dma.hbm_to_vmem [thread:$0]  %s15, 256, %s17, [#allocation3], 128, 128, 8
    $region5: #{tpu_custom_call.1} parent=1 // pred_fallthru
      _
    // Predicated region
    $region6: #{tpu_custom_call.1} parent=1 // pred_check
      _
    $region7: #{tpu_custom_call.1} parent=1 // pred_check_branch
      %24 = sbr.rel (0) target = $region9
    $region8: #{tpu_custom_call.1} parent=1 // pred_region
      %26 = vsyncadd [#allocation6], 0
      %s27 = sshll.u32 %s1, 4
      %s28 = int_to_ptr.hbm [resolvable:$true] %s27
      %s29 = sshll.u32 [#allocation5], 4
      %s30 = int_to_ptr.vmem [resolvable:$true] %s29
      %35 = dma.hbm_to_vmem [thread:$0]  %s28, 2048, %s30, [#allocation6], 128, 128, 8
    $region9: #{tpu_custom_call.1} parent=1 // pred_fallthru
      _
    // Predicated region
    $region10: #{tpu_custom_call.1} parent=1 // pred_check
      _
    $region11: #{tpu_custom_call.1} parent=1 // pred_check_branch
      %37 = sbr.rel (0) target = $region13
    $region12: #{tpu_custom_call.1} parent=1 // pred_region
      %39 = dma.done [#allocation3], 256
    $region13: #{tpu_custom_call.1} parent=1 // pred_fallthru
      _
    // Predicated region
    $region14: #{tpu_custom_call.1} parent=1 // pred_check
      _
    $region15: #{tpu_custom_call.1} parent=1 // pred_check_branch
      %41 = sbr.rel (0) target = $region17
    $region16: #{tpu_custom_call.1} parent=1 // pred_region
      %43 = dma.done [#allocation6], 2048
    $region17: #{tpu_custom_call.1} parent=1 // pred_fallthru
      _
    %v44 = vld [vmem:[#allocation2] sm:$0xff]
    %v45 = vld [vmem:[#allocation2 + $0x8] sm:$0xff]
    %v46 = vmul.f32 %v44, %v44
    %v47 = vmul.f32 %v45, %v45
    %48 = vadd.xlane.f32.xlu0 %v46
    %v49 = vpop.xlane.xlu0 %48
    %50 = vadd.xlane.f32.xlu0 %v47
    %v51 = vpop.xlane.xlu0 %50
    %v52 = vrcp.pop 128.0
    %v53 = vmul.f32 128.0, %v52
    %v54 = vsub.f32 1.0, %v53
    %v55 = vmul.f32 %v52, %v54
    %v56 = vadd.f32 %v52, %v55
    %vm57 = vweird.f32 %v52
    %v58 = vsel %vm57, %v52, %v56
    %v59 = vmul.f32 %v49, %v58
    %v60 = vmul.f32 %v51, %v58
    %v61 = vadd.f32 %v59, 1e-05
    %v62 = vadd.f32 %v60, 1e-05
    %v63 = vrsqrt.pop %v61
    %v64 = vmul.f32 %v63, %v61
    %v65 = vmul.f32 %v64, %v63
    %v66 = vmul.f32 0.5, %v65
    %v67 = vsub.f32 1.5, %v66
    %v68 = vmul.f32 %v63, %v67
    %vm69 = vweird.f32 %v61
    %vm70 = vweird.f32 %v63
    %vm71 = vmor %vm69, %vm70
    %v72 = vsel %vm71, %v63, %v68
    %v73 = vrsqrt.pop %v62
    %v74 = vmul.f32 %v73, %v62
    %v75 = vmul.f32 %v74, %v73
    %v76 = vmul.f32 0.5, %v75
    %v77 = vsub.f32 1.5, %v76
    %v78 = vmul.f32 %v73, %v77
    %vm79 = vweird.f32 %v62
    %vm80 = vweird.f32 %v73
    %vm81 = vmor %vm79, %vm80
    %v82 = vsel %vm81, %v73, %v78
    %v83 = vmul.f32 %v44, %v72
    %v84 = vmul.f32 %v45, %v82
    %v85 = vld [vmem:[#allocation5] sm:$0xff]
    %v86 = vld [vmem:[#allocation5 + $0x8] sm:$0xff]
    %v87 = vld [vmem:[#allocation5 + $0x10] sm:$0xff]
    %v88 = vld [vmem:[#allocation5 + $0x18] sm:$0xff]
    %v89 = vld [vmem:[#allocation5 + $0x20] sm:$0xff]
    %v90 = vld [vmem:[#allocation5 + $0x28] sm:$0xff]
    %v91 = vld [vmem:[#allocation5 + $0x30] sm:$0xff]
    %v92 = vld [vmem:[#allocation5 + $0x38] sm:$0xff]
    %v93 = vld [vmem:[#allocation5 + $0x40] sm:$0xff]
    %v94 = vld [vmem:[#allocation5 + $0x48] sm:$0xff]
    %v95 = vld [vmem:[#allocation5 + $0x50] sm:$0xff]
    %v96 = vld [vmem:[#allocation5 + $0x58] sm:$0xff]
    %v97 = vld [vmem:[#allocation5 + $0x60] sm:$0xff]
    %v98 = vld [vmem:[#allocation5 + $0x68] sm:$0xff]
    %v99 = vld [vmem:[#allocation5 + $0x70] sm:$0xff]
    %v100 = vld [vmem:[#allocation5 + $0x78] sm:$0xff]
    %101 = vmatpush.msra.mxu0 %v100
    %102 = vmatpush.msra.mxu0 %v99
    %103 = vmatpush.msra.mxu0 %v98
    %104 = vmatpush.msra.mxu0 %v97
    %105 = vmatpush.msra.mxu0 %v96
    %106 = vmatpush.msra.mxu0 %v95
    %107 = vmatpush.msra.mxu0 %v94
    %108 = vmatpush.msra.mxu0 %v93
    %109 = vmatpush.msra.mxu0 %v92
    %110 = vmatpush.msra.mxu0 %v91
    %111 = vmatpush.msra.mxu0 %v90
    %112 = vmatpush.msra.mxu0 %v89
    %113 = vmatpush.msra.mxu0 %v88
    %114 = vmatpush.msra.mxu0 %v87
    %115 = vmatpush.msra.mxu0 %v86
    %116 = vmatpush.msra.mxu0 %v85
    %117 = vmatmul.f32.gmra.mxu0 %v83
    %v118 = vpop.f32.mrf.mxu0
    %v119 = vadd.f32 0.0, %v118
    %120 = vmatmul.f32.gmra.mxu0 %v84
    %v121 = vpop.f32.mrf.mxu0
    %v122 = vadd.f32 0.0, %v121
    %123 = vdwg.mxu0
    %v124 = vadd.f32 %v44, %v119
    %v125 = vadd.f32 %v45, %v122
    %126 = vst [vmem:[#allocation7] sm:$0xff] %v124
    %127 = vst [vmem:[#allocation7 + $0x8] sm:$0xff] %v125
    // Predicated region
    $region18: #{tpu_custom_call.1} parent=1 // pred_check
      _
    $region19: #{tpu_custom_call.1} parent=1 // pred_check_branch
      %129 = sbr.rel (0) target = $region21
    $region20: #{tpu_custom_call.1} parent=1 // pred_region
      %131 = vsyncadd [#allocation4], 0
      %s132 = sshll.u32 [#allocation7], 4
      %s133 = int_to_ptr.vmem [resolvable:$true] %s132
      %s134 = sshll.u32 %s2, 4
      %s135 = int_to_ptr.hbm [resolvable:$true] %s134
      %140 = dma.vmem_to_hbm [thread:$0]  %s133, 256, %s135, [#allocation4], 128, 128, 8
    $region21: #{tpu_custom_call.1} parent=1 // pred_fallthru
      _
    // Predicated region
    $region22: #{tpu_custom_call.1} parent=1 // pred_check
      _
    $region23: #{tpu_custom_call.1} parent=1 // pred_check_branch
      %142 = sbr.rel (0) target = $region25
    $region24: #{tpu_custom_call.1} parent=1 // pred_region
      %144 = dma.done [#allocation4], 256
    $region25: #{tpu_custom_call.1} parent=1 // pred_fallthru
      _
    %145 = vsyncpa [#allocation3], 1
    %146 = vsyncpa [#allocation6], 1
    %147 = vsyncpa [#allocation4], 1

</llo_original>
